<compile_context>
chip_gen: v7x
topology: tpu7x:2x2x1
jax: 0.10.0
libtpu: 0.0.40
codegen_flags: <defaults>
</compile_context>

<pallas_src>
import functools
import math

import jax
import jax.numpy as jnp
from jax import lax
from jax.experimental import pallas as pl
from jax.experimental.pallas import tpu as pltpu


def _round_up(x, m):
    return (x + m - 1) // m * m


# ---------------------------------------------------------------------------
# Kernel
# ---------------------------------------------------------------------------
def _sce_kernel(logits_ref, label_ref, loss_ref, cnt_ref, loss_acc, cnt_acc, *,
                alpha, beta, ignore_index, neg_log_clamp, hw):
    """logits_ref: (1, C, TN) native dtype; label_ref: (1, 1, TN) int32.

    Outputs (per batch element b): loss_ref / cnt_ref, each (1, 1, 128) f32
    holding the weighted loss-sum and valid-pixel count broadcast across lanes.
    """
    i = pl.program_id(1)                                    # pixel-tile index

    @pl.when(i == 0)
    def _init():
        loss_acc[...] = jnp.zeros_like(loss_acc)
        cnt_acc[...] = jnp.zeros_like(cnt_acc)

    x = logits_ref[0].astype(jnp.float32)                   # (C, TN)
    lbl = label_ref[0]                                      # (1, TN) int32
    C, TN = x.shape

    # Validity: drop ignore_index pixels and (statically, only if the tile
    # grid is ragged) out-of-bounds lanes of the last tile.  Logits in OOB
    # lanes are forced to 0.0 BEFORE exp so garbage/NaN can never reach the
    # masked sums (NaN * 0 == NaN).
    if (hw % TN) != 0:
        lane = i * TN + lax.broadcasted_iota(jnp.int32, (1, TN), 1)
        lane_valid = lane < hw
        x = jnp.where(lane_valid, x, 0.0)
        valid = jnp.logical_and(lane_valid, lbl != ignore_index)
    else:
        valid = lbl != ignore_index
    validf = valid.astype(jnp.float32)                      # (1, TN)

    # Numerically stable softmax pieces over the (tiny) class/sublane axis.
    m = jnp.max(x, axis=0, keepdims=True)                   # (1, TN)
    e = jnp.exp(x - m)                                      # (C, TN) one exp
    s = jnp.sum(e, axis=0, keepdims=True)                   # (1, TN)
    lse = m + jnp.log(s)

    # True-class selection via one-hot compare over C (C is tiny).
    cls = lax.broadcasted_iota(jnp.int32, (C, TN), 0)
    onehot = cls == lbl
    x_true = jnp.sum(jnp.where(onehot, x, 0.0), axis=0, keepdims=True)
    e_true = jnp.sum(jnp.where(onehot, e, 0.0), axis=0, keepdims=True)

    ce = lse - x_true                                       # -log p_true
    p_true = e_true * pl.reciprocal(s, approx=True)         # EUP approx recip
    rce = neg_log_clamp * (1.0 - p_true)                    # closed-form RCE

    # Lane-wide accumulation (pure VALU adds); cross-lane reduce deferred.
    loss_acc[...] += (alpha * ce + beta * rce) * validf
    cnt_acc[...] += validf

    @pl.when(i == pl.num_programs(1) - 1)
    def _finalize():
        lsum = jnp.sum(loss_acc[...], axis=1, keepdims=True)    # (1, 1)
        csum = jnp.sum(cnt_acc[...], axis=1, keepdims=True)
        loss_ref[...] = jnp.broadcast_to(lsum[:, :, None], loss_ref.shape)
        cnt_ref[...] = jnp.broadcast_to(csum[:, :, None], cnt_ref.shape)


# ---------------------------------------------------------------------------
# Wrapper
# ---------------------------------------------------------------------------
@functools.partial(jax.jit, static_argnames=("alpha", "beta", "ignore_index"))
def symmetric_cross_entropy_loss(logits_nchw, label_bhw, alpha=1.0, beta=1.0,
                                 ignore_index=255):
    B, C, H, W = logits_nchw.shape
    HW = H * W

    # Free reshapes for contiguous NCHW / BHW layouts — no transpose, no
    # dtype cast of the big logits tensor, no pad copy.
    logits_3d = logits_nchw.reshape(B, C, HW)
    label_3d = label_bhw.reshape(B, 1, HW).astype(jnp.int32)

    # Large lane-dense tile (multiple of 128).  32768 f32 lanes * 7 classes is
    # ~0.9 MiB per logits block -> near HBM roofline while keeping the
    # double-buffered footprint far below even v5e's 16 MiB scoped VMEM.
    TN = min(32768, _round_up(HW, 128))
    num_tiles = pl.cdiv(HW, TN)

    kernel = functools.partial(
        _sce_kernel,
        alpha=float(alpha), beta=float(beta),
        ignore_index=int(ignore_index),
        neg_log_clamp=float(-math.log(1e-4)),
        hw=HW)

    loss_part, cnt_part = pl.pallas_call(
        kernel,
        out_shape=(jax.ShapeDtypeStruct((B, 1, 128), jnp.float32),
                   jax.ShapeDtypeStruct((B, 1, 128), jnp.float32)),
        grid_spec=pltpu.PrefetchScalarGridSpec(
            num_scalar_prefetch=0,
            grid=(B, num_tiles),
            in_specs=[
                pl.BlockSpec((1, C, TN), lambda b, i: (b, 0, i)),
                pl.BlockSpec((1, 1, TN), lambda b, i: (b, 0, i)),
            ],
            out_specs=[
                pl.BlockSpec((1, 1, 128), lambda b, i: (b, 0, 0)),
                pl.BlockSpec((1, 1, 128), lambda b, i: (b, 0, 0)),
            ],
            scratch_shapes=[pltpu.VMEM((1, TN), jnp.float32)] * 2,
        ),
        compiler_params=pltpu.CompilerParams(
            dimension_semantics=("parallel", "arbitrary")),
    )(logits_3d, label_3d)

    # Tiny cross-batch combine + normalization in plain JAX (keeps the batch
    # grid axis embarrassingly parallel for v7x megacore).
    loss_sum = jnp.sum(loss_part[:, 0, 0])
    cnt = jnp.sum(cnt_part[:, 0, 0])
    # NOTE: if every pixel is ignore_index this yields NaN, matching PyTorch's
    # mean over an empty selection.
    return loss_sum / cnt


# ---------------------------------------------------------------------------
# Plain-JAX reference (verification only) — mirrors the PyTorch formula.
# ---------------------------------------------------------------------------
def _reference_loss(logits_nchw, label_bhw, alpha=1.0, beta=1.0,
                    ignore_index=255):
    B, C, H, W = logits_nchw.shape
    logits = jnp.transpose(logits_nchw, (1, 0, 2, 3)).reshape(C, -1)   # (C,N)
    label = label_bhw.reshape(-1)                                      # (N,)
    valid = (label != ignore_index).astype(jnp.float32)
    cnt = jnp.sum(valid)

    logp = jax.nn.log_softmax(logits.astype(jnp.float32), axis=0)
    p = jax.nn.softmax(logits.astype(jnp.float32), axis=0)
    onehot = jax.nn.one_hot(label, C, axis=0, dtype=jnp.float32)       # (C,N)
    ce_per = -jnp.sum(onehot * logp, axis=0)
    log_oh = jnp.log(jnp.clip(onehot, 0.0001, 1.0))
    rce_per = jnp.sum(-p * log_oh, axis=0)

    ce = jnp.sum(ce_per * valid) / cnt
    rce = jnp.sum(rce_per * valid) / cnt
    return alpha * ce + beta * rce


if __name__ == "__main__":
    key = jax.random.PRNGKey(0)
    lkey, ykey, mkey = jax.random.split(key, 3)

    # Small shapes consistent with the module: batch=2, num_classes=7, 16x16.
    B, C, H, W = 2, 7, 16, 16
    logits = jax.random.normal(lkey, (B, C, H, W), dtype=jnp.float32)
    label = jax.random.randint(ykey, (B, H, W), 0, C, dtype=jnp.int32)
    # Sprinkle in ignore_index pixels to exercise the masking path.
    ignore_mask = jax.random.bernoulli(mkey, 0.1, (B, H, W))
    label = jnp.where(ignore_mask, 255, label)

    loss = symmetric_cross_entropy_loss(logits, label, alpha=1.0, beta=1.0)
    loss = jax.block_until_ready(loss)
    assert loss.shape == (), loss.shape

    ref = jax.block_until_ready(_reference_loss(logits, label, 1.0, 1.0))
    # Tolerance accounts for the EUP approximate reciprocal used for p_true
    # (<=~1e-3 relative on the final scalar; exact otherwise).
    assert jnp.allclose(loss, ref, rtol=2e-3, atol=2e-3), (
        float(loss), float(ref))

    print("KERNEL_OK")
</pallas_src>

<mosaic_0001>
module attributes {stable_mosaic.version = 11 : i64} {
  func.func @_sce_kernel(%arg0: i32, %arg1: i32, %arg2: memref<1x7x256xf32, #tpu.memory_space<vmem>>, %arg3: memref<1x1x256xi32, #tpu.memory_space<vmem>>, %arg4: memref<1x1x128xf32, #tpu.memory_space<vmem>>, %arg5: memref<1x1x128xf32, #tpu.memory_space<vmem>>, %arg6: memref<1x256xf32, #tpu.memory_space<vmem>>, %arg7: memref<1x256xf32, #tpu.memory_space<vmem>>) attributes {dimension_semantics = [#tpu.dimension_semantics<parallel>, #tpu.dimension_semantics<arbitrary>], iteration_bounds = array<i64: 2, 1>, scalar_prefetch = 0 : i64, scratch_operands = 2 : i64, tpu.core_type = #tpu.core_type<tc>, window_params = [{transform_indices = @transform_0, window_bounds = array<i64: 1, 7, 256>}, {transform_indices = @transform_1, window_bounds = array<i64: 1, 1, 256>}, {transform_indices = @transform_2, window_bounds = array<i64: 1, 1, 128>}, {transform_indices = @transform_3, window_bounds = array<i64: 1, 1, 128>}]} {
    %c0_i32 = arith.constant 0 : i32
    %0 = arith.cmpi eq, %arg1, %c0_i32 : i32
    %1 = arith.extui %0 : i1 to i32
    %c0_i32_0 = arith.constant 0 : i32
    %2 = arith.cmpi ne, %1, %c0_i32_0 : i32
    scf.if %2 {
      %cst_25 = arith.constant 0.000000e+00 : f32
      %53 = vector.broadcast %cst_25 : f32 to vector<1x256xf32>
      %c0_26 = arith.constant 0 : index
      %c0_27 = arith.constant 0 : index
      %54 = vector.load %arg6[%c0_26, %c0_27] : memref<1x256xf32, #tpu.memory_space<vmem>>, vector<1x256xf32>
      tpu.vector_store %arg6[%c0_26, %c0_27], %53 {strides = array<i32>} : memref<1x256xf32, #tpu.memory_space<vmem>>, vector<1x256xf32>,
      %cst_28 = arith.constant 0.000000e+00 : f32
      %55 = vector.broadcast %cst_28 : f32 to vector<1x256xf32>
      %c0_29 = arith.constant 0 : index
      %c0_30 = arith.constant 0 : index
      %56 = vector.load %arg7[%c0_29, %c0_30] : memref<1x256xf32, #tpu.memory_space<vmem>>, vector<1x256xf32>
      tpu.vector_store %arg7[%c0_29, %c0_30], %55 {strides = array<i32>} : memref<1x256xf32, #tpu.memory_space<vmem>>, vector<1x256xf32>,
    } else {
    }
    %c0 = arith.constant 0 : index
    %c0_1 = arith.constant 0 : index
    %c0_2 = arith.constant 0 : index
    %3 = vector.load %arg2[%c0, %c0_1, %c0_2] : memref<1x7x256xf32, #tpu.memory_space<vmem>>, vector<1x7x256xf32>
    %4 = vector.shape_cast %3 : vector<1x7x256xf32> to vector<7x256xf32>
    %c0_3 = arith.constant 0 : index
    %c0_4 = arith.constant 0 : index
    %c0_5 = arith.constant 0 : index
    %5 = vector.load %arg3[%c0_3, %c0_4, %c0_5] : memref<1x1x256xi32, #tpu.memory_space<vmem>>, vector<1x1x256xi32>
    %6 = vector.shape_cast %5 : vector<1x1x256xi32> to vector<1x256xi32>
    %c255_i32 = arith.constant 255 : i32
    %7 = vector.broadcast %c255_i32 : i32 to vector<1x256xi32>
    %8 = arith.cmpi ne, %6, %7 : vector<1x256xi32>
    %9 = arith.extui %8 : vector<1x256xi1> to vector<1x256xi32>
    %10 = arith.sitofp %9 : vector<1x256xi32> to vector<1x256xf32>
    %cst = arith.constant dense<0xFF800000> : vector<256xf32>
    %11 = vector.multi_reduction <maximumf>, %4, %cst [0] : vector<7x256xf32> to vector<256xf32>
    %12 = vector.shape_cast %11 : vector<256xf32> to vector<1x256xf32>
    %13 = vector.broadcast %12 : vector<1x256xf32> to vector<7x256xf32>
    %14 = arith.subf %4, %13 : vector<7x256xf32>
    %15 = math.exp %14 : vector<7x256xf32>
    %cst_6 = arith.constant dense<0.000000e+00> : vector<256xf32>
    %16 = vector.multi_reduction <add>, %15, %cst_6 [0] : vector<7x256xf32> to vector<256xf32>
    %17 = vector.shape_cast %16 : vector<256xf32> to vector<1x256xf32>
    %18 = math.log %17 : vector<1x256xf32>
    %19 = arith.addf %12, %18 : vector<1x256xf32>
    %20 = tpu.iota {dimensions = array<i32: 0>} : vector<7x256xi32>
    %21 = vector.broadcast %6 : vector<1x256xi32> to vector<7x256xi32>
    %22 = arith.cmpi eq, %20, %21 : vector<7x256xi32>
    %cst_7 = arith.constant 0.000000e+00 : f32
    %23 = vector.broadcast %cst_7 : f32 to vector<7x256xf32>
    %24 = arith.select %22, %4, %23 : vector<7x256xi1>, vector<7x256xf32>
    %cst_8 = arith.constant dense<0.000000e+00> : vector<256xf32>
    %25 = vector.multi_reduction <add>, %24, %cst_8 [0] : vector<7x256xf32> to vector<256xf32>
    %26 = vector.shape_cast %25 : vector<256xf32> to vector<1x256xf32>
    %cst_9 = arith.constant 0.000000e+00 : f32
    %27 = vector.broadcast %cst_9 : f32 to vector<7x256xf32>
    %28 = arith.select %22, %15, %27 : vector<7x256xi1>, vector<7x256xf32>
    %cst_10 = arith.constant dense<0.000000e+00> : vector<256xf32>
    %29 = vector.multi_reduction <add>, %28, %cst_10 [0] : vector<7x256xf32> to vector<256xf32>
    %30 = vector.shape_cast %29 : vector<256xf32> to vector<1x256xf32>
    %31 = arith.subf %19, %26 : vector<1x256xf32>
    %32 = tpu.reciprocal %17 {approx = true} : vector<1x256xf32> -> vector<1x256xf32>
    %33 = arith.mulf %30, %32 : vector<1x256xf32>
    %cst_11 = arith.constant 1.000000e+00 : f32
    %34 = vector.broadcast %cst_11 : f32 to vector<1x256xf32>
    %35 = arith.subf %34, %33 : vector<1x256xf32>
    %cst_12 = arith.constant 9.21034049 : f32
    %36 = vector.broadcast %cst_12 : f32 to vector<1x256xf32>
    %37 = arith.mulf %36, %35 : vector<1x256xf32>
    %c0_13 = arith.constant 0 : index
    %c0_14 = arith.constant 0 : index
    %38 = vector.load %arg6[%c0_13, %c0_14] : memref<1x256xf32, #tpu.memory_space<vmem>>, vector<1x256xf32>
    %cst_15 = arith.constant 1.000000e+00 : f32
    %39 = vector.broadcast %cst_15 : f32 to vector<1x256xf32>
    %40 = arith.mulf %39, %31 : vector<1x256xf32>
    %cst_16 = arith.constant 1.000000e+00 : f32
    %41 = vector.broadcast %cst_16 : f32 to vector<1x256xf32>
    %42 = arith.mulf %41, %37 : vector<1x256xf32>
    %43 = arith.addf %40, %42 : vector<1x256xf32>
    %44 = arith.mulf %43, %10 : vector<1x256xf32>
    %45 = arith.addf %38, %44 : vector<1x256xf32>
    %c0_17 = arith.constant 0 : index
    %c0_18 = arith.constant 0 : index
    %46 = vector.load %arg6[%c0_17, %c0_18] : memref<1x256xf32, #tpu.memory_space<vmem>>, vector<1x256xf32>
    tpu.vector_store %arg6[%c0_17, %c0_18], %45 {strides = array<i32>} : memref<1x256xf32, #tpu.memory_space<vmem>>, vector<1x256xf32>,
    %c0_19 = arith.constant 0 : index
    %c0_20 = arith.constant 0 : index
    %47 = vector.load %arg7[%c0_19, %c0_20] : memref<1x256xf32, #tpu.memory_space<vmem>>, vector<1x256xf32>
    %48 = arith.addf %47, %10 : vector<1x256xf32>
    %c0_21 = arith.constant 0 : index
    %c0_22 = arith.constant 0 : index
    %49 = vector.load %arg7[%c0_21, %c0_22] : memref<1x256xf32, #tpu.memory_space<vmem>>, vector<1x256xf32>
    tpu.vector_store %arg7[%c0_21, %c0_22], %48 {strides = array<i32>} : memref<1x256xf32, #tpu.memory_space<vmem>>, vector<1x256xf32>,
    %c0_i32_23 = arith.constant 0 : i32
    %50 = arith.cmpi eq, %arg1, %c0_i32_23 : i32
    %51 = arith.extui %50 : i1 to i32
    %c0_i32_24 = arith.constant 0 : i32
    %52 = arith.cmpi ne, %51, %c0_i32_24 : i32
    scf.if %52 {
      %c0_25 = arith.constant 0 : index
      %c0_26 = arith.constant 0 : index
      %53 = vector.load %arg6[%c0_25, %c0_26] : memref<1x256xf32, #tpu.memory_space<vmem>>, vector<1x256xf32>
      %cst_27 = arith.constant dense<0.000000e+00> : vector<1xf32>
      %54 = vector.multi_reduction <add>, %53, %cst_27 [1] : vector<1x256xf32> to vector<1xf32>
      %55 = vector.shape_cast %54 : vector<1xf32> to vector<1x1xf32>
      %c0_28 = arith.constant 0 : index
      %c0_29 = arith.constant 0 : index
      %56 = vector.load %arg7[%c0_28, %c0_29] : memref<1x256xf32, #tpu.memory_space<vmem>>, vector<1x256xf32>
      %cst_30 = arith.constant dense<0.000000e+00> : vector<1xf32>
      %57 = vector.multi_reduction <add>, %56, %cst_30 [1] : vector<1x256xf32> to vector<1xf32>
      %58 = vector.shape_cast %57 : vector<1xf32> to vector<1x1xf32>
      %59 = vector.shape_cast %55 : vector<1x1xf32> to vector<1x1x1xf32>
      %60 = vector.shape_cast %59 : vector<1x1x1xf32> to vector<1x1x1xf32>
      %61 = vector.broadcast %60 : vector<1x1x1xf32> to vector<1x1x128xf32>
      %c0_31 = arith.constant 0 : index
      %c0_32 = arith.constant 0 : index
      %c0_33 = arith.constant 0 : index
      %62 = vector.load %arg4[%c0_31, %c0_32, %c0_33] : memref<1x1x128xf32, #tpu.memory_space<vmem>>, vector<1x1x128xf32>
      tpu.vector_store %arg4[%c0_31, %c0_32, %c0_33], %61 {strides = array<i32>} : memref<1x1x128xf32, #tpu.memory_space<vmem>>, vector<1x1x128xf32>,
      %63 = vector.shape_cast %58 : vector<1x1xf32> to vector<1x1x1xf32>
      %64 = vector.shape_cast %63 : vector<1x1x1xf32> to vector<1x1x1xf32>
      %65 = vector.broadcast %64 : vector<1x1x1xf32> to vector<1x1x128xf32>
      %c0_34 = arith.constant 0 : index
      %c0_35 = arith.constant 0 : index
      %c0_36 = arith.constant 0 : index
      %66 = vector.load %arg5[%c0_34, %c0_35, %c0_36] : memref<1x1x128xf32, #tpu.memory_space<vmem>>, vector<1x1x128xf32>
      tpu.vector_store %arg5[%c0_34, %c0_35, %c0_36], %65 {strides = array<i32>} : memref<1x1x128xf32, #tpu.memory_space<vmem>>, vector<1x1x128xf32>,
    } else {
    }
    return
  }
  func.func @transform_0(%arg0: i32, %arg1: i32) -> (i32, i32, i32) {
    %c0_i32 = arith.constant 0 : i32
    %c0_i32_0 = arith.constant 0 : i32
    return %arg0, %c0_i32, %arg1 : i32, i32, i32
  }
  func.func @transform_1(%arg0: i32, %arg1: i32) -> (i32, i32, i32) {
    %c0_i32 = arith.constant 0 : i32
    %c0_i32_0 = arith.constant 0 : i32
    return %arg0, %c0_i32, %arg1 : i32, i32, i32
  }
  func.func @transform_2(%arg0: i32, %arg1: i32) -> (i32, i32, i32) {
    %c0_i32 = arith.constant 0 : i32
    %c0_i32_0 = arith.constant 0 : i32
    %c0_i32_1 = arith.constant 0 : i32
    return %arg0, %c0_i32, %c0_i32_0 : i32, i32, i32
  }
  func.func @transform_3(%arg0: i32, %arg1: i32) -> (i32, i32, i32) {
    %c0_i32 = arith.constant 0 : i32
    %c0_i32_0 = arith.constant 0 : i32
    %c0_i32_1 = arith.constant 0 : i32
    return %arg0, %c0_i32, %c0_i32_0 : i32, i32, i32
  }
}

</mosaic_0001>

<llo_original>
// kernel: symmetric_cross_entropy_loss.1
$region0: #{symmetric_cross_entropy_loss.1}
  #allocation0 [shape = 'u32[]', space=smem, size = 0x4, offset = 0x4, fixed_abs, tag = 'smem constant byte address 0x4 - core index']
  #allocation1 [shape = 'u32[144,128]{1,0:T(1,128)}', space=vmem, size = 0x12000, scoped, tag = 'internal scratch']
  #allocation2 [shape = 'f32[1,256]{1,0:T(1,128)}', space=vmem, size = 0x400, scoped, tag = 'scratch operand']
  #allocation3 [shape = 'f32[1,256]{1,0:T(1,128)}', space=vmem, size = 0x400, scoped, tag = 'scratch operand']
  %s0 = inlined_call_operand.vmem [shape: f32[2,7,256], index: 0, kind: input, shape index: {}]
  %s1 = inlined_call_operand.vmem [shape: s32[2,1,256], index: 1, kind: input, shape index: {}]
  %s2 = inlined_call_operand.vmem [shape: f32[2,1,128], index: 2, kind: output, shape index: {0}]
  %s3 = inlined_call_operand.vmem [shape: f32[2,1,128], index: 3, kind: output, shape index: {1}]
  %4 = xla_tuple %s2, %s3
  %s5 = sld [smem:[#allocation0]]
  $region57: #{symmetric_cross_entropy_loss.1} parent=0
    _
  %s7 = ssub.s32 1, %s5
  %s8 = scalar_select 0, %s7, %s5
  loop: start=0, step=1, limit=4
  $region2: #{symmetric_cross_entropy_loss.1} parent=0 // loop_pre_header
    _
  $region3: #{symmetric_cross_entropy_loss.1} parent=0 // loop_header
    %s10 = sphi 0, %s14
    %p11 = scmp.ge.s32.totalorder %s10, 4
    %s17 = sphi 0, %s29
    %s18 = sphi 0, %s25
    %s19 = sphi 0, %s17
    %s20 = sphi 0, %s18
    %s21 = sphi 0, %s19
    %s22 = sphi 0, %s20
    %s34 = sphi 0, %s36
    %s37 = sphi 0, %s34
    %s38 = sphi 0, %s37
    %s54 = sphi 0, %s38
    %s62 = sphi 0, %s64
    %s65 = sphi 0, %s62
    %s66 = sphi 0, %s65
    %s82 = sphi 0, %s66
    %s88 = sphi 0, %s90
    %s91 = sphi 0, %s88
    %s92 = sphi 0, %s91
    %s108 = sphi 0, %s92
    %s114 = sphi 0, %s116
    %s117 = sphi 0, %s114
    %s118 = sphi 0, %s117
    %s134 = sphi 0, %s118
  $region4: #{symmetric_cross_entropy_loss.1} parent=0 // loop_header_branch
    %13 = sbr.rel (%p11) target = $region8
  $region5: #{symmetric_cross_entropy_loss.1} parent=0 // loop_body
    %s15 = ssub.s32 %s10, 1
    %s16 = ssub.s32 %s10, 2
    %s23 = sadd.s32 1, %s18
    %p24 = scmp.ge.s32.totalorder %s23, 1
    %s25 = scalar_select %p24, 0, %s23
    %s26 = sadd.s32 1, %s17
    %s27 = scalar_select %p24, %s26, %s17
    %p28 = scmp.ge.s32.totalorder %s27, 2
    %s29 = scalar_select %p28, 0, %s27
    %s30 = ssub.s32 %s17, %s29
    %s31 = ssub.s32 %s18, %s25
    %s32 = sor.u32 %s30, %s31
    %p33 = scmp.eq.s32.totalorder %s32, 0
    %s35 = sadd.s32 %s34, 1
    %s36 = scalar_select %p33, %s34, %s35
    %p39 = pneg %p33
    %p40 = scmp.eq.s32.totalorder %s10, 1
    %p41 = por %p39, %p40
    %p42 = scmp.ne.s32.totalorder %s34, %s37
    %p43 = scmp.eq.s32.totalorder %s10, 0
    %p44 = por %p42, %p43
    %p45 = scmp.ne.s32.totalorder %s34, %s37
    %p46 = scmp.eq.s32.totalorder %s15, 1
    %p47 = por %p45, %p46
    %p48 = scmp.ne.s32.totalorder %s37, %s38
    %p49 = scmp.eq.s32.totalorder %s15, 0
    %p50 = por %p48, %p49
    %p51 = scmp.ne.s32.totalorder %s37, %s38
    %p52 = scmp.eq.s32.totalorder %s16, 1
    %p53 = por %p51, %p52
    %p55 = scmp.ne.s32.totalorder %s38, %s54
    %p56 = scmp.eq.s32.totalorder %s16, 0
    %p57 = por %p55, %p56
    %s58 = ssub.s32 %s17, %s29
    %s59 = ssub.s32 %s18, %s25
    %s60 = sor.u32 %s58, %s59
    %p61 = scmp.eq.s32.totalorder %s60, 0
    %s63 = sadd.s32 %s62, 1
    %s64 = scalar_select %p61, %s62, %s63
    %p67 = pneg %p61
    %p68 = scmp.eq.s32.totalorder %s10, 1
    %p69 = por %p67, %p68
    %p70 = scmp.ne.s32.totalorder %s62, %s65
    %p71 = scmp.eq.s32.totalorder %s10, 0
    %p72 = por %p70, %p71
    %p73 = scmp.ne.s32.totalorder %s62, %s65
    %p74 = scmp.eq.s32.totalorder %s15, 1
    %p75 = por %p73, %p74
    %p76 = scmp.ne.s32.totalorder %s65, %s66
    %p77 = scmp.eq.s32.totalorder %s15, 0
    %p78 = por %p76, %p77
    %p79 = scmp.ne.s32.totalorder %s65, %s66
    %p80 = scmp.eq.s32.totalorder %s16, 1
    %p81 = por %p79, %p80
    %p83 = scmp.ne.s32.totalorder %s66, %s82
    %p84 = scmp.eq.s32.totalorder %s16, 0
    %p85 = por %p83, %p84
    %s86 = ssub.s32 %s17, %s29
    %p87 = scmp.eq.s32.totalorder %s86, 0
    %s89 = sadd.s32 %s88, 1
    %s90 = scalar_select %p87, %s88, %s89
    %p93 = pneg %p87
    %p94 = scmp.eq.s32.totalorder %s10, 1
    %p95 = por %p93, %p94
    %p96 = scmp.ne.s32.totalorder %s88, %s91
    %p97 = scmp.eq.s32.totalorder %s10, 0
    %p98 = por %p96, %p97
    %p99 = scmp.ne.s32.totalorder %s88, %s91
    %p100 = scmp.eq.s32.totalorder %s15, 1
    %p101 = por %p99, %p100
    %p102 = scmp.ne.s32.totalorder %s91, %s92
    %p103 = scmp.eq.s32.totalorder %s15, 0
    %p104 = por %p102, %p103
    %p105 = scmp.ne.s32.totalorder %s91, %s92
    %p106 = scmp.eq.s32.totalorder %s16, 1
    %p107 = por %p105, %p106
    %p109 = scmp.ne.s32.totalorder %s92, %s108
    %p110 = scmp.eq.s32.totalorder %s16, 0
    %p111 = por %p109, %p110
    %s112 = ssub.s32 %s17, %s29
    %p113 = scmp.eq.s32.totalorder %s112, 0
    %s115 = sadd.s32 %s114, 1
    %s116 = scalar_select %p113, %s114, %s115
    %p119 = pneg %p113
    %p120 = scmp.eq.s32.totalorder %s10, 1
    %p121 = por %p119, %p120
    %p122 = scmp.ne.s32.totalorder %s114, %s117
    %p123 = scmp.eq.s32.totalorder %s10, 0
    %p124 = por %p122, %p123
    %p125 = scmp.ne.s32.totalorder %s114, %s117
    %p126 = scmp.eq.s32.totalorder %s15, 1
    %p127 = por %p125, %p126
    %p128 = scmp.ne.s32.totalorder %s117, %s118
    %p129 = scmp.eq.s32.totalorder %s15, 0
    %p130 = por %p128, %p129
    %p131 = scmp.ne.s32.totalorder %s117, %s118
    %p132 = scmp.eq.s32.totalorder %s16, 1
    %p133 = por %p131, %p132
    %p135 = scmp.ne.s32.totalorder %s118, %s134
    %p136 = scmp.eq.s32.totalorder %s16, 0
    %p137 = por %p135, %p136
    %p138 = scmp.le.s32.totalorder 1, %s10
    %p139 = scmp.lt.s32.totalorder %s10, 3
    %p140 = pnand %p138, %p139
    %p141 = pneg %p140
    // Predicated region
    $region9: #{symmetric_cross_entropy_loss.1} parent=5 // pred_check
      _
    $region10: #{symmetric_cross_entropy_loss.1} parent=5 // pred_check_branch
      %143 = sbr.rel (%p140) target = $region12
    $region11: #{symmetric_cross_entropy_loss.1} parent=5 // pred_region
      %s144 = ssub.s32 %s10, 1
    $region12: #{symmetric_cross_entropy_loss.1} parent=5 // pred_fallthru
      _
    %p145 = scmp.lt.s32.totalorder %s10, 2
    // Predicated region
    $region13: #{symmetric_cross_entropy_loss.1} parent=5 // pred_check
      %p146 = pneg %p145
    $region14: #{symmetric_cross_entropy_loss.1} parent=5 // pred_check_branch
      %148 = sbr.rel (%p146) target = $region16
    $region15: #{symmetric_cross_entropy_loss.1} parent=5 // pred_region
      // Predicated region
      $region17: #{symmetric_cross_entropy_loss.1} parent=15 // pred_check
        %p149 = pneg %p44
      $region18: #{symmetric_cross_entropy_loss.1} parent=15 // pred_check_branch
        %151 = sbr.rel (%p149) target = $region20
      $region19: #{symmetric_cross_entropy_loss.1} parent=15 // pred_region
        %s152 = smul.u32 2, %s18
        %p153 = scmp.lt.s32.totalorder %s17, 1
        %s154 = scalar_select %p153, %s17, 1
        %p155 = scmp.lt.s32.totalorder %s152, 1
        %s156 = scalar_select %p155, %s152, 1
        %s157 = smul.addr %s154, 2
        %s158 = sadd.s32 %s156, %s157
        %s159 = smul.addr %s158, 8
        %s160 = scalar_lea.vmem %s0, %s159
        %s161 = smul.u32 2, %s18
      $region20: #{symmetric_cross_entropy_loss.1} parent=15 // pred_fallthru
        _
      // Predicated region
      $region21: #{symmetric_cross_entropy_loss.1} parent=15 // pred_check
        %p162 = pneg %p72
      $region22: #{symmetric_cross_entropy_loss.1} parent=15 // pred_check_branch
        %164 = sbr.rel (%p162) target = $region24
      $region23: #{symmetric_cross_entropy_loss.1} parent=15 // pred_region
        %s165 = smul.u32 2, %s18
        %p166 = scmp.lt.s32.totalorder %s17, 1
        %s167 = scalar_select %p166, %s17, 1
        %p168 = scmp.lt.s32.totalorder %s165, 1
        %s169 = scalar_select %p168, %s165, 1
        %s170 = smul.addr %s167, 2
        %s171 = sadd.s32 %s169, %s170
        %s172 = scalar_lea.vmem %s1, %s171
        %s173 = smul.u32 2, %s18
      $region24: #{symmetric_cross_entropy_loss.1} parent=15 // pred_fallthru
        _
    $region16: #{symmetric_cross_entropy_loss.1} parent=5 // pred_fallthru
      _
    %p174 = scmp.le.s32.totalorder 1, %s10
    %p175 = scmp.lt.s32.totalorder %s10, 3
    %p176 = pnand %p174, %p175
    %p177 = pneg %p176
    // Predicated region
    $region25: #{symmetric_cross_entropy_loss.1} parent=5 // pred_check
      _
    $region26: #{symmetric_cross_entropy_loss.1} parent=5 // pred_check_branch
      %179 = sbr.rel (%p176) target = $region28
    $region27: #{symmetric_cross_entropy_loss.1} parent=5 // pred_region
      %s180 = ssub.s32 %s10, 1
      %s181 = smul.u32 2, %s20
      %p182 = scmp.lt.s32.totalorder %s19, 1
      %s183 = scalar_select %p182, %s19, 1
      %p184 = scmp.lt.s32.totalorder %s181, 1
      %s185 = scalar_select %p184, %s181, 1
      %s186 = smul.addr %s183, 2
      %s187 = sadd.s32 %s185, %s186
      %s188 = smul.addr %s187, 8
      %s189 = scalar_lea.vmem %s0, %s188
      %p190 = pneg %p50
      %p191 = pneg %p47
      %s192 = smul.u32 2, %s20
      %p193 = scmp.lt.s32.totalorder %s19, 1
      %s194 = scalar_select %p193, %s19, 1
      %p195 = scmp.lt.s32.totalorder %s192, 1
      %s196 = scalar_select %p195, %s192, 1
      %s197 = smul.addr %s194, 2
      %s198 = sadd.s32 %s196, %s197
      %s199 = scalar_lea.vmem %s1, %s198
      %p200 = pneg %p78
      %p201 = pneg %p75
      %p202 = pneg %p104
      %p203 = pneg %p101
      %p204 = scmp.lt.s32.totalorder %s19, 1
      %s205 = scalar_select %p204, %s19, 1
      %s206 = scalar_lea.vmem %s2, %s205
      %p207 = pneg %p130
      %p208 = pneg %p127
      %p209 = scmp.lt.s32.totalorder %s19, 1
      %s210 = scalar_select %p209, %s19, 1
      %s211 = scalar_lea.vmem %s3, %s210
      %s212 = smul.u32 2, %s20
      %p213 = scmp.lt.s32.totalorder %s19, 1
      %s214 = scalar_select %p213, %s19, 1
      %p215 = scmp.lt.s32.totalorder %s212, 1
      %s216 = scalar_select %p215, %s212, 1
      %s217 = smul.addr %s214, 2
      %s218 = sadd.s32 %s216, %s217
      %s219 = smul.addr %s218, 8
      %s220 = scalar_lea.vmem %s0, %s219
      %s221 = smul.u32 2, %s20
      %s222 = smul.u32 2, %s20
      %p223 = scmp.lt.s32.totalorder %s19, 1
      %s224 = scalar_select %p223, %s19, 1
      %p225 = scmp.lt.s32.totalorder %s222, 1
      %s226 = scalar_select %p225, %s222, 1
      %s227 = smul.addr %s224, 2
      %s228 = sadd.s32 %s226, %s227
      %s229 = scalar_lea.vmem %s1, %s228
      %s230 = smul.u32 2, %s20
      %p231 = scmp.lt.s32.totalorder %s19, 1
      %s232 = scalar_select %p231, %s19, 1
      %s233 = scalar_lea.vmem %s2, %s232
      %p234 = scmp.lt.s32.totalorder %s19, 1
      %s235 = scalar_select %p234, %s19, 1
      %s236 = scalar_lea.vmem %s3, %s235
      %p237 = scmp.eq.s32.totalorder %s20, 0
      // Predicated region
      $region29: #{symmetric_cross_entropy_loss.1} parent=27 // pred_check
        %p238 = pneg %p237
      $region30: #{symmetric_cross_entropy_loss.1} parent=27 // pred_check_branch
        %240 = sbr.rel (%p238) target = $region32
      $region31: #{symmetric_cross_entropy_loss.1} parent=27 // pred_region
        %v241 = vlaneseq
        %vm242 = vcmp.ge.s32.totalorder %v241, 0
        %vm243 = vcmp.lt.s32.totalorder %v241, 256
        %vm244 = vmand %vm242, %vm243
        %245 = vst.msk [vmem:[#allocation2] sm:$0x3] %vm244, 0.0
        %246 = vst.msk [vmem:[#allocation3] sm:$0x3] %vm244, 0.0
      $region32: #{symmetric_cross_entropy_loss.1} parent=27 // pred_fallthru
        _
      %v247 = vld [vmem:[%s220] sm:$0x7f]
      %v248 = vld [vmem:[%s220 + $0x8] sm:$0x7f]
      %v249 = vld [vmem:[%s229] sm:$0x3]
      %vm250 = vcmp.ne.s32.totalorder %v249, 255
      %v251 = vsel %vm250, 1, 0
      %v252 = vcvt.s32.f32 %v251
      %vm253 = vcmask 1046528
      %v254 = vsel %vm253, %v247, -inf
      %v255 = vrot.slane %v254, 4
      %v256 = vmax.f32 %v254, %v255
      %v257 = vrot.slane %v256, 2
      %v258 = vmax.f32 %v256, %v257
      %v259 = vrot.slane %v258, 1
      %v260 = vmax.f32 %v258, %v259
      %v261 = vsel %vm253, %v248, -inf
      %v262 = vrot.slane %v261, 4
      %v263 = vmax.f32 %v261, %v262
      %v264 = vrot.slane %v263, 2
      %v265 = vmax.f32 %v263, %v264
      %v266 = vrot.slane %v265, 1
      %v267 = vmax.f32 %v265, %v266
      %v268 = vsub.f32 %v247, %v260
      %v269 = vsub.f32 %v248, %v267
      %v270 = vmul.f32 %v268, 1.442695
      %v271 = vpow.pop %v270
      %v272 = vmul.f32 %v269, 1.442695
      %v273 = vpow.pop %v272
      %v274 = vsel %vm253, %v271, 0.0
      %v275 = vrot.slane %v274, 4
      %v276 = vadd.f32 %v274, %v275
      %v277 = vrot.slane %v276, 2
      %v278 = vadd.f32 %v276, %v277
      %v279 = vrot.slane %v278, 1
      %v280 = vadd.f32 %v278, %v279
      %v281 = vsel %vm253, %v273, 0.0
      %v282 = vrot.slane %v281, 4
      %v283 = vadd.f32 %v281, %v282
      %v284 = vrot.slane %v283, 2
      %v285 = vadd.f32 %v283, %v284
      %v286 = vrot.slane %v285, 1
      %v287 = vadd.f32 %v285, %v286
      %v288 = vlog2.pop %v280
      %v289 = vmul.f32 %v288, 0.6931472
      %v290 = vlog2.pop %v287
      %v291 = vmul.f32 %v290, 0.6931472
      %v292 = vadd.f32 %v260, %v289
      %v293 = vadd.f32 %v267, %v291
      %v294 = vlaneseq
      %v295 = vshrl.u32 %v294, 7
      %v296 = vlaneseq
      %v297 = vshrl.u32 %v296, 7
      %v298 = vsub.s32 0, %v297
      %v299 = vrot.slane %v249, %v298
      %v300 = vlaneseq
      %v301 = vshrl.u32 %v300, 7
      %v302 = vsub.s32 1, %v301
      %v303 = vrot.slane %v249, %v302
      %vm304 = vcmp.eq.s32.totalorder %v295, %v299
      %vm305 = vcmp.eq.s32.totalorder %v295, %v303
      %v306 = vsel %vm304, %v247, 0.0
      %v307 = vsel %vm305, %v248, 0.0
      %v308 = vsel %vm253, %v306, 0.0
      %v309 = vrot.slane %v308, 4
      %v310 = vadd.f32 %v308, %v309
      %v311 = vrot.slane %v310, 2
      %v312 = vadd.f32 %v310, %v311
      %v313 = vrot.slane %v312, 1
      %v314 = vadd.f32 %v312, %v313
      %v315 = vsel %vm253, %v307, 0.0
      %v316 = vrot.slane %v315, 4
      %v317 = vadd.f32 %v315, %v316
      %v318 = vrot.slane %v317, 2
      %v319 = vadd.f32 %v317, %v318
      %v320 = vrot.slane %v319, 1
      %v321 = vadd.f32 %v319, %v320
      %v322 = vsel %vm304, %v271, 0.0
      %v323 = vsel %vm305, %v273, 0.0
      %v324 = vsel %vm253, %v322, 0.0
      %v325 = vrot.slane %v324, 4
      %v326 = vadd.f32 %v324, %v325
      %v327 = vrot.slane %v326, 2
      %v328 = vadd.f32 %v326, %v327
      %v329 = vrot.slane %v328, 1
      %v330 = vadd.f32 %v328, %v329
      %v331 = vsel %vm253, %v323, 0.0
      %v332 = vrot.slane %v331, 4
      %v333 = vadd.f32 %v331, %v332
      %v334 = vrot.slane %v333, 2
      %v335 = vadd.f32 %v333, %v334
      %v336 = vrot.slane %v335, 1
      %v337 = vadd.f32 %v335, %v336
      %v338 = vsub.f32 %v292, %v314
      %v339 = vsub.f32 %v293, %v321
      %v340 = vrcp.pop %v280
      %v341 = vrcp.pop %v287
      %v342 = vmul.f32 %v330, %v340
      %v343 = vmul.f32 %v337, %v341
      %v344 = vsub.f32 1.0, %v342
      %v345 = vsub.f32 1.0, %v343
      %v346 = vmul.f32 %v344, 9.2103405
      %v347 = vmul.f32 %v345, 9.2103405
      %v348 = vld [vmem:[#allocation2] sm:$0x3]
      %v349 = vadd.f32 %v338, %v346
      %v350 = vadd.f32 %v339, %v347
      %v352 = vlaneseq
      %v353 = vshrl.u32 %v352, 7
      %v354 = vsub.s32 0, %v353
      %v355 = vrot.slane %v252, %v354
      %v356 = vlaneseq
      %v357 = vshrl.u32 %v356, 7
      %v358 = vsub.s32 1, %v357
      %v359 = vrot.slane %v252, %v358
      %v362 = vmul.f32 %v349, %v355
      %v363 = vmul.f32 %v350, %v359
      %v366 = vcombine.low %v362, %v363
      %v368 = vunpack.c.l.s4 1966171168
      %v369 = vunpack.c.0.s8 %v368
      %v370 = vlaneseq
      %v371 = vshrl.u32 %v370, 7
      %v372 = vsub.s32 %v369, %v371
      %v373 = vrot.slane %v366, %v372
      %v375 = vunpack.c.l.s4 1966171168
      %v376 = vunpack.c.0.s8 %v375
      %v377 = vlaneseq
      %v378 = vshrl.u32 %v377, 7
      %v379 = vsub.s32 %v376, %v378
      %v380 = vrot.slane %v373, %v379
      %v382 = vadd.f32 %v348, %v380
      %v383 = vlaneseq
      %vm384 = vcmp.ge.s32.totalorder %v383, 0
      %vm385 = vcmp.lt.s32.totalorder %v383, 256
      %vm386 = vmand %vm384, %vm385
      %387 = vst.msk [vmem:[#allocation2] sm:$0x3] %vm386, %v382
      %v388 = vld [vmem:[#allocation3] sm:$0x3]
      %v389 = vadd.f32 %v388, %v252
      %390 = vst.msk [vmem:[#allocation3] sm:$0x3] %vm386, %v389
      // Predicated region
      $region33: #{symmetric_cross_entropy_loss.1} parent=27 // pred_check
        %p391 = pneg %p237
      $region34: #{symmetric_cross_entropy_loss.1} parent=27 // pred_check_branch
        %393 = sbr.rel (%p391) target = $region36
      $region35: #{symmetric_cross_entropy_loss.1} parent=27 // pred_region
        %v394 = vld [vmem:[#allocation2] sm:$0x3]
        %v396 = vlaneseq
        %v397 = vshrl.u32 %v396, 7
        %v398 = vsub.s32 0, %v397
        %v399 = vrot.slane %v394, %v398
        %v400 = vlaneseq
        %v401 = vshrl.u32 %v400, 7
        %v402 = vsub.s32 1, %v401
        %v403 = vrot.slane %v394, %v402
        %vm406 = vcmask 1040384
        %v407 = vsel %vm406, %v399, 0.0
        %v408 = vsel %vm406, %v403, 0.0
        %v409 = vadd.f32 %v407, %v408
        %410 = vadd.xlane.f32.xlu0 %v409
        %v411 = vpop.xlane.xlu0 %410
        %v412 = vld [vmem:[#allocation3] sm:$0x3]
        %v414 = vlaneseq
        %v415 = vshrl.u32 %v414, 7
        %v416 = vsub.s32 0, %v415
        %v417 = vrot.slane %v412, %v416
        %v418 = vlaneseq
        %v419 = vshrl.u32 %v418, 7
        %v420 = vsub.s32 1, %v419
        %v421 = vrot.slane %v412, %v420
        %v424 = vsel %vm406, %v417, 0.0
        %v425 = vsel %vm406, %v421, 0.0
        %v426 = vadd.f32 %v424, %v425
        %427 = vadd.xlane.f32.xlu0 %v426
        %v428 = vpop.xlane.xlu0 %427
        %429 = vst [vmem:[%s233] sm:$0x1] %v411
        %430 = vst [vmem:[%s236] sm:$0x1] %v428
      $region36: #{symmetric_cross_entropy_loss.1} parent=27 // pred_fallthru
        _
      %p431 = scmp.lt.s32.totalorder %s19, 1
      %s432 = scalar_select %p431, %s19, 1
      %s433 = scalar_lea.vmem %s2, %s432
      %p434 = scmp.lt.s32.totalorder %s19, 1
      %s435 = scalar_select %p434, %s19, 1
      %s436 = scalar_lea.vmem %s3, %s435
      // Predicated region
      $region37: #{symmetric_cross_entropy_loss.1} parent=27 // pred_check
        %p437 = pneg %p101
      $region38: #{symmetric_cross_entropy_loss.1} parent=27 // pred_check_branch
        %439 = sbr.rel (%p437) target = $region40
      $region39: #{symmetric_cross_entropy_loss.1} parent=27 // pred_region
        _
      $region40: #{symmetric_cross_entropy_loss.1} parent=27 // pred_fallthru
        _
      // Predicated region
      $region41: #{symmetric_cross_entropy_loss.1} parent=27 // pred_check
        %p440 = pneg %p127
      $region42: #{symmetric_cross_entropy_loss.1} parent=27 // pred_check_branch
        %442 = sbr.rel (%p440) target = $region44
      $region43: #{symmetric_cross_entropy_loss.1} parent=27 // pred_region
        _
      $region44: #{symmetric_cross_entropy_loss.1} parent=27 // pred_fallthru
        _
    $region28: #{symmetric_cross_entropy_loss.1} parent=5 // pred_fallthru
      _
    %p443 = scmp.le.s32.totalorder 2, %s10
    // Predicated region
    $region45: #{symmetric_cross_entropy_loss.1} parent=5 // pred_check
      %p444 = pneg %p443
    $region46: #{symmetric_cross_entropy_loss.1} parent=5 // pred_check_branch
      %446 = sbr.rel (%p444) target = $region48
    $region47: #{symmetric_cross_entropy_loss.1} parent=5 // pred_region
      %s447 = ssub.s32 %s10, 2
      // Predicated region
      $region49: #{symmetric_cross_entropy_loss.1} parent=47 // pred_check
        %p448 = pneg %p107
      $region50: #{symmetric_cross_entropy_loss.1} parent=47 // pred_check_branch
        %450 = sbr.rel (%p448) target = $region52
      $region51: #{symmetric_cross_entropy_loss.1} parent=47 // pred_region
        %p451 = scmp.lt.s32.totalorder %s21, 1
        %s452 = scalar_select %p451, %s21, 1
        %s453 = scalar_lea.vmem %s2, %s452
      $region52: #{symmetric_cross_entropy_loss.1} parent=47 // pred_fallthru
        _
      // Predicated region
      $region53: #{symmetric_cross_entropy_loss.1} parent=47 // pred_check
        %p454 = pneg %p133
      $region54: #{symmetric_cross_entropy_loss.1} parent=47 // pred_check_branch
        %456 = sbr.rel (%p454) target = $region56
      $region55: #{symmetric_cross_entropy_loss.1} parent=47 // pred_region
        %p457 = scmp.lt.s32.totalorder %s21, 1
        %s458 = scalar_select %p457, %s21, 1
        %s459 = scalar_lea.vmem %s3, %s458
      $region56: #{symmetric_cross_entropy_loss.1} parent=47 // pred_fallthru
        _
    $region48: #{symmetric_cross_entropy_loss.1} parent=5 // pred_fallthru
      _
  $region6: #{symmetric_cross_entropy_loss.1} parent=0 // loop_footer
    %s14 = sadd.s32 1, %s10
  $region7: #{symmetric_cross_entropy_loss.1} parent=0 // loop_footer_branch
    %9 = sbr.rel target = $region3
  $region8: #{symmetric_cross_entropy_loss.1} parent=0 // loop_exit
    _

</llo_original>
